<compile_context>
chip_gen: v5e
topology: v5e:2x2
jax: 0.10.0
libtpu: 0.0.40
codegen_flags: <defaults>
</compile_context>

<pallas_src>
import jax
import jax.numpy as jnp
from jax.experimental import pallas as pl
from jax.experimental.pallas import tpu as pltpu


TARGET_BLOCK_BYTES = 8 * 1024 * 1024   # ~8 MiB per block => ~32 MiB with 2x(in+out) buffers
VMEM_LIMIT_BYTES = 48 * 1024 * 1024    # safe on v7x (64 MiB physical) and v5e/v6e (128 MiB)


def _exp_zero_one_kernel(a_ref, b_ref, x_ref, o_ref):
    # a_ref, b_ref are shape-(1,) f32 scalars in SMEM.
    # Fold the negation into the scalars once per block (saves a per-element VPU op).
    neg_a = -a_ref[0]
    neg_b = -b_ref[0]
    # Keep compute in f32 regardless of input dtype (exp accuracy / v5e EUP width).
    x = x_ref[...].astype(jnp.float32)
    y = 1.0 - jnp.exp(neg_a + neg_b * x)
    o_ref[...] = jnp.maximum(y, 0.0).astype(o_ref.dtype)


def _round_up(n, m):
    return -(-n // m) * m


def exp_zero_one(x, a, b):
    """relu(1 - exp(-a - b * x)), elementwise. a, b are shape-(1,) params."""
    orig_shape = x.shape
    dtype = x.dtype
    total = x.size
    itemsize = jnp.dtype(dtype).itemsize
    # dtype-aware sublane multiple: f32 -> 8, bf16 -> 16, int8/fp8 -> 32
    sublane = {4: 8, 2: 16, 1: 32}.get(itemsize, 8)

    # Pick a lane-dense width that divides the flat size exactly (no padding
    # pass). Fall back to a minimal pad to a multiple of 128 only if unavoidable.
    lane = None
    for w in (1024, 512, 256, 128):
        if total % w == 0:
            lane = w
            break
    if lane is None:
        lane = 128
        padded_total = _round_up(total, lane)
    else:
        padded_total = total
    pad = padded_total - total

    rows = padded_total // lane

    x_flat = x.reshape(-1)
    if pad:
        # TODO(synk): rare unaligned tail; this pad + final slice cost one extra
        # HBM pass each. All lane-width-aligned shapes skip this path entirely.
        x_flat = jnp.pad(x_flat, (0, pad))
    x2 = x_flat.reshape(rows, lane)

    # Row tile: large blocks (~TARGET_BLOCK_BYTES), multiple of the sublane count.
    max_tile_r = max(
        sublane, (TARGET_BLOCK_BYTES // (lane * itemsize)) // sublane * sublane
    )
    if rows > max_tile_r:
        tile_r = max_tile_r
    elif rows >= 2 * sublane:
        # Split into (at least) 2 grid steps so v7x can shard across both TCs.
        tile_r = _round_up(-(-rows // 2), sublane)
    else:
        # Tiny input: one block covering the whole array (full-extent dim 0 is legal).
        tile_r = rows

    grid = (pl.cdiv(rows, tile_r),)

    cost = pl.CostEstimate(
        flops=3 * padded_total,
        transcendentals=padded_total,
        bytes_accessed=2 * padded_total * itemsize,
    )

    out2 = pl.pallas_call(
        _exp_zero_one_kernel,
        out_shape=jax.ShapeDtypeStruct((rows, lane), dtype),
        grid_spec=pl.GridSpec(
            grid=grid,
            in_specs=[
                pl.BlockSpec(memory_space=pltpu.SMEM),              # a (f32 scalar)
                pl.BlockSpec(memory_space=pltpu.SMEM),              # b (f32 scalar)
                pl.BlockSpec((tile_r, lane), lambda i: (i, 0)),     # x tile
            ],
            out_specs=pl.BlockSpec((tile_r, lane), lambda i: (i, 0)),
        ),
        compiler_params=pltpu.CompilerParams(
            dimension_semantics=("parallel",),
            vmem_limit_bytes=VMEM_LIMIT_BYTES,
        ),
        cost_estimate=cost,
    )(a.astype(jnp.float32), b.astype(jnp.float32), x2)

    if pad:
        return out2.reshape(-1)[:total].reshape(orig_shape)
    return out2.reshape(orig_shape)


if __name__ == "__main__":
    key = jax.random.PRNGKey(0)
    # Small NCHW input consistent with a conv-style module: (N, C, H, W)
    x = jax.random.normal(key, (2, 4, 16, 16), dtype=jnp.float32)

    # Deterministic parameter init matching the module's __init__:
    # a = 0.2, b = 1.4 (shape (1,) each)
    a = jnp.array([0.2], dtype=jnp.float32)
    b = jnp.array([1.4], dtype=jnp.float32)

    out = exp_zero_one(x, a, b)
    jax.block_until_ready(out)

    # Reference check in plain JAX
    ref = jnp.maximum(1.0 - jnp.exp(-a[0] - b[0] * x), 0.0)
    assert out.shape == x.shape
    assert jnp.allclose(out, ref, atol=1e-6, rtol=1e-6)

    print("KERNEL_OK")
</pallas_src>

<mosaic_0001>
module attributes {stable_mosaic.version = 11 : i64} {
  func.func @_exp_zero_one_kernel(%arg0: i32, %arg1: memref<1xf32, #tpu.memory_space<smem>>, %arg2: memref<1xf32, #tpu.memory_space<smem>>, %arg3: memref<2x1024xf32, #tpu.memory_space<vmem>>, %arg4: memref<2x1024xf32, #tpu.memory_space<vmem>>) attributes {dimension_semantics = [#tpu.dimension_semantics<parallel>], iteration_bounds = array<i64: 1>, scalar_prefetch = 0 : i64, scratch_operands = 0 : i64, tpu.core_type = #tpu.core_type<tc>, window_params = [{transform_indices = @transform_0, window_bounds = array<i64: 1>}, {transform_indices = @transform_1, window_bounds = array<i64: 1>}, {transform_indices = @transform_2, window_bounds = array<i64: 2, 1024>}, {transform_indices = @transform_3, window_bounds = array<i64: 2, 1024>}]} {
    %c0 = arith.constant 0 : index
    %0 = memref.load %arg1[%c0] : memref<1xf32, #tpu.memory_space<smem>>
    %cst = arith.constant 0.000000e+00 : f32
    %1 = arith.subf %cst, %0 : f32
    %c0_0 = arith.constant 0 : index
    %2 = memref.load %arg2[%c0_0] : memref<1xf32, #tpu.memory_space<smem>>
    %cst_1 = arith.constant 0.000000e+00 : f32
    %3 = arith.subf %cst_1, %2 : f32
    %c0_2 = arith.constant 0 : index
    %c0_3 = arith.constant 0 : index
    %4 = vector.load %arg3[%c0_2, %c0_3] : memref<2x1024xf32, #tpu.memory_space<vmem>>, vector<2x1024xf32>
    %5 = vector.broadcast %3 : f32 to vector<2x1024xf32>
    %6 = arith.mulf %5, %4 : vector<2x1024xf32>
    %7 = vector.broadcast %1 : f32 to vector<2x1024xf32>
    %8 = arith.addf %7, %6 : vector<2x1024xf32>
    %9 = math.exp %8 : vector<2x1024xf32>
    %cst_4 = arith.constant 1.000000e+00 : f32
    %10 = vector.broadcast %cst_4 : f32 to vector<2x1024xf32>
    %11 = arith.subf %10, %9 : vector<2x1024xf32>
    %cst_5 = arith.constant 0.000000e+00 : f32
    %12 = vector.broadcast %cst_5 : f32 to vector<2x1024xf32>
    %13 = arith.maximumf %11, %12 : vector<2x1024xf32>
    %c0_6 = arith.constant 0 : index
    %c0_7 = arith.constant 0 : index
    %14 = vector.load %arg4[%c0_6, %c0_7] : memref<2x1024xf32, #tpu.memory_space<vmem>>, vector<2x1024xf32>
    tpu.vector_store %arg4[%c0_6, %c0_7], %13 {strides = array<i32>} : memref<2x1024xf32, #tpu.memory_space<vmem>>, vector<2x1024xf32>,
    return
  }
  func.func @transform_0(%arg0: i32) -> i32 {
    %c0_i32 = arith.constant 0 : i32
    %c0_i32_0 = arith.constant 0 : i32
    return %c0_i32 : i32
  }
  func.func @transform_1(%arg0: i32) -> i32 {
    %c0_i32 = arith.constant 0 : i32
    %c0_i32_0 = arith.constant 0 : i32
    return %c0_i32 : i32
  }
  func.func @transform_2(%arg0: i32) -> (i32, i32) {
    %c0_i32 = arith.constant 0 : i32
    %c0_i32_0 = arith.constant 0 : i32
    return %arg0, %c0_i32 : i32, i32
  }
  func.func @transform_3(%arg0: i32) -> (i32, i32) {
    %c0_i32 = arith.constant 0 : i32
    %c0_i32_0 = arith.constant 0 : i32
    return %arg0, %c0_i32 : i32, i32
  }
}

</mosaic_0001>

<llo_original>
// kernel: tpu_custom_call.1
$region0: #{tpu_custom_call.1}
  #allocation0 [shape = 'u32[]', space=smem, size = 0x4, offset = 0x4, fixed_abs, tag = 'smem constant byte address 0x4 - core index']
  #allocation1 [shape = 'u32[72,128]{1,0:T(1,128)}', space=vmem, size = 0x9000, scoped, tag = 'internal scratch']
  #allocation2 [shape = 'f32[1]{0:T(128)S(6)}', space=smem, size = 0x200, scoped, tag = 'scoped memory for tpu_custom_call.1']
  #allocation3 [shape = 'f32[1]{0:T(128)S(6)}', space=smem, size = 0x200, scoped, tag = 'scoped memory for tpu_custom_call.1']
  %s0 = inlined_call_operand.<no memory space> [shape: f32[1], index: 0, kind: input, shape index: {}]
  %s1 = inlined_call_operand.<no memory space> [shape: f32[1], index: 1, kind: input, shape index: {}]
  %s2 = inlined_call_operand.hbm [shape: f32[2,1024], index: 2, kind: input, shape index: {}]
  %s3 = inlined_call_operand.hbm [shape: f32[2,1024], index: 3, kind: output, shape index: {}]
  %s4 = sld [smem:[#allocation0]]
  $region26: #{tpu_custom_call.1} parent=0
    _
  %s6 = ssub.s32 1, %s4
  %s7 = scalar_select 0, %s6, %s4
  %8 = sst [smem:[#allocation2]] %s0
  %9 = sst [smem:[#allocation3]] %s1
  $region1: #{tpu_custom_call.1} parent=0
    #allocation4 [shape = 'u8[8192]{0}', space=vmem, size = 0x2000, scoped, tag = 'input window, operand 2, single buffered']
    #allocation5 [shape = 's32[1]{0}', space=sflag, size = 0x4, scoped, tag = 'scoped memory for tpu_custom_call.1']
    #allocation6 [shape = 's32[1]{0}', space=sflag, size = 0x4, scoped, tag = 'scoped memory for tpu_custom_call.1']
    #allocation7 [shape = 'u8[8192]{0}', space=vmem, size = 0x2000, scoped, tag = 'output window, operand 0, single buffered']
    %10 = vsyncpa [#allocation5], 0
    %11 = vsyncpa [#allocation6], 0
    // Predicated region
    $region2: #{tpu_custom_call.1} parent=1 // pred_check
      _
    $region3: #{tpu_custom_call.1} parent=1 // pred_check_branch
      %13 = sbr.rel (0) target = $region5
    $region4: #{tpu_custom_call.1} parent=1 // pred_region
      _
    $region5: #{tpu_custom_call.1} parent=1 // pred_fallthru
      _
    // Predicated region
    $region6: #{tpu_custom_call.1} parent=1 // pred_check
      _
    $region7: #{tpu_custom_call.1} parent=1 // pred_check_branch
      %15 = sbr.rel (0) target = $region9
    $region8: #{tpu_custom_call.1} parent=1 // pred_region
      _
    $region9: #{tpu_custom_call.1} parent=1 // pred_fallthru
      _
    // Predicated region
    $region10: #{tpu_custom_call.1} parent=1 // pred_check
      _
    $region11: #{tpu_custom_call.1} parent=1 // pred_check_branch
      %17 = sbr.rel (0) target = $region13
    $region12: #{tpu_custom_call.1} parent=1 // pred_region
      %19 = vsyncadd [#allocation5], 0
      %s21 = sshll.u32 %s2, 4
      %s22 = int_to_ptr.hbm [resolvable:$true] %s21
      %s23 = sshll.u32 [#allocation4], 4
      %s24 = int_to_ptr.vmem [resolvable:$true] %s23
      %26 = dma.hbm_to_vmem [thread:$0]  %s22, 256, %s24, [#allocation5]
    $region13: #{tpu_custom_call.1} parent=1 // pred_fallthru
      _
    // Predicated region
    $region14: #{tpu_custom_call.1} parent=1 // pred_check
      _
    $region15: #{tpu_custom_call.1} parent=1 // pred_check_branch
      %28 = sbr.rel (0) target = $region17
    $region16: #{tpu_custom_call.1} parent=1 // pred_region
      %30 = dma.done [#allocation5], 256
    $region17: #{tpu_custom_call.1} parent=1 // pred_fallthru
      _
    %s31 = sld [smem:[#allocation2]]
    %s32 = ssub.f32 0.0, %s31
    %s33 = sld [smem:[#allocation3]]
    %s34 = ssub.f32 0.0, %s33
    %v35 = vld [vmem:[#allocation4] sm:$0xff]
    %v36 = vld [vmem:[#allocation4 + $0x8] sm:$0xff]
    %v37 = vstv %s34
    %v38 = vmul.f32 %v37, %v35
    %v39 = vmul.f32 %v37, %v36
    %v40 = vstv %s32
    %v41 = vadd.f32 %v40, %v38
    %v42 = vadd.f32 %v40, %v39
    %v43 = vmul.f32 %v41, 1.442695
    %v44 = vpow.pop %v43
    %v45 = vmul.f32 %v42, 1.442695
    %v46 = vpow.pop %v45
    %v47 = vsub.f32 1.0, %v44
    %v48 = vsub.f32 1.0, %v46
    %v49 = vmax.f32 %v47, 0.0
    %v50 = vmax.f32 %v48, 0.0
    %51 = vst [vmem:[#allocation7] sm:$0xff] %v49
    %52 = vst [vmem:[#allocation7 + $0x8] sm:$0xff] %v50
    // Predicated region
    $region18: #{tpu_custom_call.1} parent=1 // pred_check
      _
    $region19: #{tpu_custom_call.1} parent=1 // pred_check_branch
      %54 = sbr.rel (0) target = $region21
    $region20: #{tpu_custom_call.1} parent=1 // pred_region
      %56 = vsyncadd [#allocation6], 0
      %s58 = sshll.u32 [#allocation7], 4
      %s59 = int_to_ptr.vmem [resolvable:$true] %s58
      %s60 = sshll.u32 %s3, 4
      %s61 = int_to_ptr.hbm [resolvable:$true] %s60
      %63 = dma.vmem_to_hbm [thread:$0]  %s59, 256, %s61, [#allocation6]
    $region21: #{tpu_custom_call.1} parent=1 // pred_fallthru
      _
    // Predicated region
    $region22: #{tpu_custom_call.1} parent=1 // pred_check
      _
    $region23: #{tpu_custom_call.1} parent=1 // pred_check_branch
      %65 = sbr.rel (0) target = $region25
    $region24: #{tpu_custom_call.1} parent=1 // pred_region
      %67 = dma.done [#allocation6], 256
    $region25: #{tpu_custom_call.1} parent=1 // pred_fallthru
      _
    %68 = vsyncpa [#allocation5], 1
    %69 = vsyncpa [#allocation6], 1

</llo_original>
